<compile_context>
chip_gen: v7x
topology: tpu7x:2x2x1
jax: 0.10.0
libtpu: 0.0.40
codegen_flags: <defaults>
</compile_context>

<pallas_src>
import functools

import jax
import jax.numpy as jnp
from jax.experimental import pallas as pl
from jax.experimental.pallas import tpu as pltpu


def _round_up(x, m):
    return (x + m - 1) // m * m


def _adapter_kernel(x_ref, wd_ref, wu_ref, g_ref, b_ref, o_ref, *, inv_h, eps):
    # x_ref:  (TM, Hp)  input rows, native dtype, padded lanes are zero
    # wd_ref: (Hp, r)   lora_down^T                (padded rows are zero)
    # wu_ref: (r, Hp)   lora_up^T * (alpha/r)      (padded cols are zero)
    # g_ref:  (1, Hp)   layernorm gamma (f32, padded lanes zero)
    # b_ref:  (1, Hp)   layernorm beta  (f32, padded lanes zero)
    x = x_ref[...]

    # LoRA path on the MXU: operands stay in the activation dtype (bf16 is fed
    # natively), accumulation in f32.
    down = jnp.dot(x, wd_ref[...], preferred_element_type=jnp.float32)      # (TM, r)
    up = jnp.dot(down.astype(x.dtype), wu_ref[...],
                 preferred_element_type=jnp.float32)                        # (TM, Hp)

    # Residual add (scaling already folded into wu); LN math in f32.
    y = x.astype(jnp.float32) + up                                          # (TM, Hp)

    # Single-pass LayerNorm statistics over the TRUE hidden size.
    # Padded lanes of y are exactly zero, so sums over Hp == sums over H.
    s = jnp.sum(y, axis=-1, keepdims=True)
    sq = jnp.sum(y * y, axis=-1, keepdims=True)
    mean = s * inv_h
    var = sq * inv_h - mean * mean                                          # biased var
    y_norm = (y - mean) * jax.lax.rsqrt(var + eps)
    out = y_norm * g_ref[...] + b_ref[...]

    o_ref[...] = out.astype(o_ref.dtype)


def vision_lora_adapter(x, w_down, w_up, gamma, beta, *, alpha=32, r=16,
                        eps=1e-5, row_tile=512):
    """x: (B, S, H).  w_down: (r, H) torch layout.  w_up: (H, r) torch layout."""
    B, S, H = x.shape
    N = B * S
    dtype = x.dtype
    itemsize = jnp.dtype(dtype).itemsize

    # Lane-dense layout: hidden dim padded to a multiple of 128.
    Hp = _round_up(H, 128)
    # Sublane packing granularity for the row tile.
    sub = 16 if dtype == jnp.bfloat16 else 8

    # Cap the row tile so ~2x(in)+2x(out) double-buffered tiles fit a budget
    # that is safe on v7x (64 MiB VMEM) as well as v5e/v6e (128 MiB).
    vmem_budget_bytes = 24 * 1024 * 1024
    bytes_per_row = Hp * itemsize
    tm_cap = max(sub, vmem_budget_bytes // (4 * bytes_per_row))
    tm = min(row_tile, tm_cap, _round_up(N, sub))
    tm = max(sub, _round_up(tm, sub))

    Np = _round_up(N, tm)           # pad rows up to the tile (exact grid)

    scaling = float(alpha) / float(r)

    # Zero-padded, lane-dense activation slab.  Fast path avoids the extra
    # HBM copy when no padding is needed.
    x2d = x.reshape(N, H)
    needs_pad = (Np != N) or (Hp != H)
    if needs_pad:
        x2d = jnp.zeros((Np, Hp), dtype=dtype).at[:N, :H].set(x2d)

    # Pre-transpose weights, fold LoRA scaling into the up-projection, match
    # the activation dtype so the MXU sees native operands.
    wd_t = jnp.zeros((Hp, r), dtype=dtype).at[:H, :].set(
        jnp.transpose(w_down).astype(dtype))
    wu_t = jnp.zeros((r, Hp), dtype=dtype).at[:, :H].set(
        (jnp.transpose(w_up) * scaling).astype(dtype))
    g2d = jnp.zeros((1, Hp), jnp.float32).at[0, :H].set(gamma.astype(jnp.float32))
    b2d = jnp.zeros((1, Hp), jnp.float32).at[0, :H].set(beta.astype(jnp.float32))

    kernel = functools.partial(_adapter_kernel, inv_h=1.0 / float(H), eps=float(eps))

    # Advisory cost hint: 2 matmuls of 2*N*H*r flops each; mem-bound traffic.
    cost = pl.CostEstimate(
        flops=4 * N * H * r,
        transcendentals=N,
        bytes_accessed=2 * Np * Hp * itemsize + (2 * Hp * r) * itemsize + 2 * Hp * 4,
    )

    out2d = pl.pallas_call(
        kernel,
        out_shape=jax.ShapeDtypeStruct((Np, Hp), dtype),
        grid_spec=pltpu.PrefetchScalarGridSpec(
            num_scalar_prefetch=0,
            grid=(Np // tm,),
            in_specs=[
                pl.BlockSpec((tm, Hp), lambda i: (i, 0)),   # x rows
                pl.BlockSpec((Hp, r), lambda i: (0, 0)),    # W_down^T (resident)
                pl.BlockSpec((r, Hp), lambda i: (0, 0)),    # W_up^T * scaling (resident)
                pl.BlockSpec((1, Hp), lambda i: (0, 0)),    # gamma
                pl.BlockSpec((1, Hp), lambda i: (0, 0)),    # beta
            ],
            out_specs=pl.BlockSpec((tm, Hp), lambda i: (i, 0)),
        ),
        compiler_params=pltpu.CompilerParams(
            dimension_semantics=("parallel",),              # lets v7x shard rows over 2 TCs
            vmem_limit_bytes=48 * 1024 * 1024,
        ),
        cost_estimate=cost,
    )(x2d, wd_t, wu_t, g2d, b2d)

    if needs_pad:
        out2d = out2d[:N, :H]
    return out2d.reshape(B, S, H)


def _reference(x, w_down, w_up, gamma, beta, *, alpha=32, r=16, eps=1e-5):
    scaling = float(alpha) / float(r)
    xf = x.astype(jnp.float32)
    lora = (xf @ w_down.astype(jnp.float32).T) @ w_up.astype(jnp.float32).T * scaling
    y = xf + lora
    mean = jnp.mean(y, axis=-1, keepdims=True)
    var = jnp.mean((y - mean) ** 2, axis=-1, keepdims=True)
    y_norm = (y - mean) / jnp.sqrt(var + eps)
    return (y_norm * gamma + beta).astype(x.dtype)


if __name__ == "__main__":
    # Small shapes consistent with the module: hidden_size=32, r=16, alpha=32.
    B, S, H, R = 2, 8, 32, 16

    key = jax.random.PRNGKey(0)
    kx, kd, ku = jax.random.split(key, 3)

    x = jax.random.normal(kx, (B, S, H), dtype=jnp.float32)

    # Deterministic synthetic parameters (shapes follow the module __init__).
    # NOTE: the PyTorch module zero-inits lora_up (making LoRA a no-op at
    # step 0); we use small random values so the matmul path is exercised.
    w_down = jax.random.uniform(kd, (R, H), dtype=jnp.float32,
                                minval=-0.1, maxval=0.1)   # nn.Linear(H, R).weight
    w_up = jax.random.uniform(ku, (H, R), dtype=jnp.float32,
                              minval=-0.1, maxval=0.1)     # nn.Linear(R, H).weight
    gamma = jnp.ones((H,), dtype=jnp.float32)               # nn.LayerNorm default
    beta = jnp.zeros((H,), dtype=jnp.float32)

    # TODO(synk): dropout (p=0.1, training mode) is omitted; kernel implements
    # the eval-mode forward where dropout is the identity.

    out = vision_lora_adapter(x, w_down, w_up, gamma, beta, alpha=32, r=R)
    out = jax.block_until_ready(out)

    ref = _reference(x, w_down, w_up, gamma, beta, alpha=32, r=R)
    assert out.shape == (B, S, H)
    assert jnp.allclose(out, ref, atol=2e-5, rtol=2e-5), "mismatch vs reference"

    print("KERNEL_OK")
</pallas_src>

<mosaic_0001>
module attributes {stable_mosaic.version = 11 : i64} {
  func.func @_adapter_kernel(%arg0: i32, %arg1: memref<16x128xf32, #tpu.memory_space<vmem>>, %arg2: memref<128x16xf32, #tpu.memory_space<vmem>>, %arg3: memref<16x128xf32, #tpu.memory_space<vmem>>, %arg4: memref<1x128xf32, #tpu.memory_space<vmem>>, %arg5: memref<1x128xf32, #tpu.memory_space<vmem>>, %arg6: memref<16x128xf32, #tpu.memory_space<vmem>>) attributes {dimension_semantics = [#tpu.dimension_semantics<parallel>], iteration_bounds = array<i64: 1>, scalar_prefetch = 0 : i64, scratch_operands = 0 : i64, tpu.core_type = #tpu.core_type<tc>, window_params = [{transform_indices = @transform_0, window_bounds = array<i64: 16, 128>}, {pipeline_mode = #tpu.pipeline_mode<synchronous>, transform_indices = @transform_1, window_bounds = array<i64: 128, 16>}, {pipeline_mode = #tpu.pipeline_mode<synchronous>, transform_indices = @transform_2, window_bounds = array<i64: 16, 128>}, {pipeline_mode = #tpu.pipeline_mode<synchronous>, transform_indices = @transform_3, window_bounds = array<i64: 1, 128>}, {pipeline_mode = #tpu.pipeline_mode<synchronous>, transform_indices = @transform_4, window_bounds = array<i64: 1, 128>}, {transform_indices = @transform_5, window_bounds = array<i64: 16, 128>}]} {
    %c0 = arith.constant 0 : index
    %c0_0 = arith.constant 0 : index
    %0 = vector.load %arg1[%c0, %c0_0] : memref<16x128xf32, #tpu.memory_space<vmem>>, vector<16x128xf32>
    %c0_1 = arith.constant 0 : index
    %c0_2 = arith.constant 0 : index
    %1 = vector.load %arg2[%c0_1, %c0_2] : memref<128x16xf32, #tpu.memory_space<vmem>>, vector<128x16xf32>
    %cst = arith.constant dense<0.000000e+00> : vector<16x16xf32>
    %2 = tpu.matmul %0, %1, %cst {dimension_numbers = #tpu.dot_dimension_numbers<[1], [0], [0], [1], [0, 0, 1, 1], [], []>} : vector<16x128xf32>, vector<128x16xf32>, vector<16x16xf32> -> vector<16x16xf32>
    %c0_3 = arith.constant 0 : index
    %c0_4 = arith.constant 0 : index
    %3 = vector.load %arg3[%c0_3, %c0_4] : memref<16x128xf32, #tpu.memory_space<vmem>>, vector<16x128xf32>
    %cst_5 = arith.constant dense<0.000000e+00> : vector<16x128xf32>
    %4 = tpu.matmul %2, %3, %cst_5 {dimension_numbers = #tpu.dot_dimension_numbers<[1], [0], [0], [1], [0, 0, 1, 1], [], []>} : vector<16x16xf32>, vector<16x128xf32>, vector<16x128xf32> -> vector<16x128xf32>
    %5 = arith.addf %0, %4 : vector<16x128xf32>
    %cst_6 = arith.constant dense<0.000000e+00> : vector<16xf32>
    %6 = vector.multi_reduction <add>, %5, %cst_6 [1] : vector<16x128xf32> to vector<16xf32>
    %7 = vector.shape_cast %6 : vector<16xf32> to vector<16x1xf32>
    %8 = arith.mulf %5, %5 : vector<16x128xf32>
    %cst_7 = arith.constant dense<0.000000e+00> : vector<16xf32>
    %9 = vector.multi_reduction <add>, %8, %cst_7 [1] : vector<16x128xf32> to vector<16xf32>
    %10 = vector.shape_cast %9 : vector<16xf32> to vector<16x1xf32>
    %cst_8 = arith.constant 3.125000e-02 : f32
    %11 = vector.broadcast %cst_8 : f32 to vector<16x1xf32>
    %12 = arith.mulf %7, %11 : vector<16x1xf32>
    %cst_9 = arith.constant 3.125000e-02 : f32
    %13 = vector.broadcast %cst_9 : f32 to vector<16x1xf32>
    %14 = arith.mulf %10, %13 : vector<16x1xf32>
    %15 = arith.mulf %12, %12 : vector<16x1xf32>
    %16 = arith.subf %14, %15 : vector<16x1xf32>
    %17 = vector.broadcast %12 : vector<16x1xf32> to vector<16x128xf32>
    %18 = arith.subf %5, %17 : vector<16x128xf32>
    %cst_10 = arith.constant 9.99999974E-6 : f32
    %19 = vector.broadcast %cst_10 : f32 to vector<16x1xf32>
    %20 = arith.addf %16, %19 : vector<16x1xf32>
    %21 = math.rsqrt %20 : vector<16x1xf32>
    %22 = vector.broadcast %21 : vector<16x1xf32> to vector<16x128xf32>
    %23 = arith.mulf %18, %22 : vector<16x128xf32>
    %c0_11 = arith.constant 0 : index
    %c0_12 = arith.constant 0 : index
    %24 = vector.load %arg4[%c0_11, %c0_12] : memref<1x128xf32, #tpu.memory_space<vmem>>, vector<1x128xf32>
    %25 = vector.broadcast %24 : vector<1x128xf32> to vector<16x128xf32>
    %26 = arith.mulf %23, %25 : vector<16x128xf32>
    %c0_13 = arith.constant 0 : index
    %c0_14 = arith.constant 0 : index
    %27 = vector.load %arg5[%c0_13, %c0_14] : memref<1x128xf32, #tpu.memory_space<vmem>>, vector<1x128xf32>
    %28 = vector.broadcast %27 : vector<1x128xf32> to vector<16x128xf32>
    %29 = arith.addf %26, %28 : vector<16x128xf32>
    %c0_15 = arith.constant 0 : index
    %c0_16 = arith.constant 0 : index
    %30 = vector.load %arg6[%c0_15, %c0_16] : memref<16x128xf32, #tpu.memory_space<vmem>>, vector<16x128xf32>
    tpu.vector_store %arg6[%c0_15, %c0_16], %29 {strides = array<i32>} : memref<16x128xf32, #tpu.memory_space<vmem>>, vector<16x128xf32>,
    return
  }
  func.func @transform_0(%arg0: i32) -> (i32, i32) {
    %c0_i32 = arith.constant 0 : i32
    %c0_i32_0 = arith.constant 0 : i32
    return %arg0, %c0_i32 : i32, i32
  }
  func.func @transform_1(%arg0: i32) -> (i32, i32) {
    %c0_i32 = arith.constant 0 : i32
    %c0_i32_0 = arith.constant 0 : i32
    %c0_i32_1 = arith.constant 0 : i32
    return %c0_i32, %c0_i32_0 : i32, i32
  }
  func.func @transform_2(%arg0: i32) -> (i32, i32) {
    %c0_i32 = arith.constant 0 : i32
    %c0_i32_0 = arith.constant 0 : i32
    %c0_i32_1 = arith.constant 0 : i32
    return %c0_i32, %c0_i32_0 : i32, i32
  }
  func.func @transform_3(%arg0: i32) -> (i32, i32) {
    %c0_i32 = arith.constant 0 : i32
    %c0_i32_0 = arith.constant 0 : i32
    %c0_i32_1 = arith.constant 0 : i32
    return %c0_i32, %c0_i32_0 : i32, i32
  }
  func.func @transform_4(%arg0: i32) -> (i32, i32) {
    %c0_i32 = arith.constant 0 : i32
    %c0_i32_0 = arith.constant 0 : i32
    %c0_i32_1 = arith.constant 0 : i32
    return %c0_i32, %c0_i32_0 : i32, i32
  }
  func.func @transform_5(%arg0: i32) -> (i32, i32) {
    %c0_i32 = arith.constant 0 : i32
    %c0_i32_0 = arith.constant 0 : i32
    return %arg0, %c0_i32 : i32, i32
  }
}

</mosaic_0001>

<llo_original>
// kernel: tpu_custom_call.1
$region0: #{tpu_custom_call.1}
  #allocation0 [shape = 'u32[]', space=smem, size = 0x4, offset = 0x4, fixed_abs, tag = 'smem constant byte address 0x4 - core index']
  #allocation1 [shape = 'u32[144,128]{1,0:T(1,128)}', space=vmem, size = 0x12000, scoped, tag = 'internal scratch']
  %s0 = inlined_call_operand.vmem [shape: f32[16,128], index: 0, kind: input, shape index: {}]
  %s1 = inlined_call_operand.vmem [shape: f32[128,16], index: 1, kind: input, shape index: {}]
  %s2 = inlined_call_operand.vmem [shape: f32[16,128], index: 2, kind: input, shape index: {}]
  %s3 = inlined_call_operand.vmem [shape: f32[1,128], index: 3, kind: input, shape index: {}]
  %s4 = inlined_call_operand.vmem [shape: f32[1,128], index: 4, kind: input, shape index: {}]
  %s5 = inlined_call_operand.hbm [shape: f32[16,128], index: 5, kind: output, shape index: {}]
  %s6 = sld [smem:[#allocation0]]
  $region30: #{tpu_custom_call.1} parent=0
    _
  %s8 = ssub.s32 1, %s6
  %s9 = scalar_select 0, %s8, %s6
  $region1: #{tpu_custom_call.1} parent=0
    #allocation2 [shape = 'u8[8192]{0}', space=vmem, size = 0x2000, scoped, tag = 'output window, operand 0, single buffered']
    #allocation3 [shape = 's32[1]{0}', space=sflag, size = 0x4, scoped, tag = 'scoped memory for tpu_custom_call.1']
    %10 = vsyncpa [#allocation3], 0
    // Predicated region
    $region2: #{tpu_custom_call.1} parent=1 // pred_check
      _
    $region3: #{tpu_custom_call.1} parent=1 // pred_check_branch
      %12 = sbr.rel (0) target = $region5
    $region4: #{tpu_custom_call.1} parent=1 // pred_region
      _
    $region5: #{tpu_custom_call.1} parent=1 // pred_fallthru
      _
    // Predicated region
    $region6: #{tpu_custom_call.1} parent=1 // pred_check
      _
    $region7: #{tpu_custom_call.1} parent=1 // pred_check_branch
      %14 = sbr.rel (0) target = $region9
    $region8: #{tpu_custom_call.1} parent=1 // pred_region
      _
    $region9: #{tpu_custom_call.1} parent=1 // pred_fallthru
      _
    // Predicated region
    $region10: #{tpu_custom_call.1} parent=1 // pred_check
      _
    $region11: #{tpu_custom_call.1} parent=1 // pred_check_branch
      %16 = sbr.rel (0) target = $region13
    $region12: #{tpu_custom_call.1} parent=1 // pred_region
      _
    $region13: #{tpu_custom_call.1} parent=1 // pred_fallthru
      _
    // Predicated region
    $region14: #{tpu_custom_call.1} parent=1 // pred_check
      _
    $region15: #{tpu_custom_call.1} parent=1 // pred_check_branch
      %18 = sbr.rel (0) target = $region17
    $region16: #{tpu_custom_call.1} parent=1 // pred_region
      _
    $region17: #{tpu_custom_call.1} parent=1 // pred_fallthru
      _
    // Predicated region
    $region18: #{tpu_custom_call.1} parent=1 // pred_check
      _
    $region19: #{tpu_custom_call.1} parent=1 // pred_check_branch
      %20 = sbr.rel (0) target = $region21
    $region20: #{tpu_custom_call.1} parent=1 // pred_region
      _
    $region21: #{tpu_custom_call.1} parent=1 // pred_fallthru
      _
    %v21 = vld [vmem:[%s0] sm:$0xff]
    %v22 = vld [vmem:[%s0 + $0x8] sm:$0xff]
    %v23 = vld [vmem:[%s1] sm:$0xff]
    %v24 = vld [vmem:[%s1 + $0x8] sm:$0xff]
    %v25 = vld [vmem:[%s1 + $0x10] sm:$0xff]
    %v26 = vld [vmem:[%s1 + $0x18] sm:$0xff]
    %v27 = vld [vmem:[%s1 + $0x20] sm:$0xff]
    %v28 = vld [vmem:[%s1 + $0x28] sm:$0xff]
    %v29 = vld [vmem:[%s1 + $0x30] sm:$0xff]
    %v30 = vld [vmem:[%s1 + $0x38] sm:$0xff]
    %v31 = vld [vmem:[%s1 + $0x40] sm:$0xff]
    %v32 = vld [vmem:[%s1 + $0x48] sm:$0xff]
    %v33 = vld [vmem:[%s1 + $0x50] sm:$0xff]
    %v34 = vld [vmem:[%s1 + $0x58] sm:$0xff]
    %v35 = vld [vmem:[%s1 + $0x60] sm:$0xff]
    %v36 = vld [vmem:[%s1 + $0x68] sm:$0xff]
    %v37 = vld [vmem:[%s1 + $0x70] sm:$0xff]
    %v38 = vld [vmem:[%s1 + $0x78] sm:$0xff]
    %39 = vmatprep.subr.mxu0 0.0
    %40 = vmatpush1.msra.mxu0 %v23
    %41 = vmatprep.subr.mxu0 0.0
    %42 = vmatpush1.msra.mxu0 %v24
    %43 = vmatprep.subr.mxu0 0.0
    %44 = vmatpush1.msra.mxu0 %v25
    %45 = vmatprep.subr.mxu0 0.0
    %46 = vmatpush1.msra.mxu0 %v26
    %47 = vmatprep.subr.mxu0 0.0
    %48 = vmatpush1.msra.mxu0 %v27
    %49 = vmatprep.subr.mxu0 0.0
    %50 = vmatpush1.msra.mxu0 %v28
    %51 = vmatprep.subr.mxu0 0.0
    %52 = vmatpush1.msra.mxu0 %v29
    %53 = vmatprep.subr.mxu0 0.0
    %54 = vmatpush1.msra.mxu0 %v30
    %55 = vmatprep.subr.mxu0 0.0
    %56 = vmatpush1.msra.mxu0 %v31
    %57 = vmatprep.subr.mxu0 0.0
    %58 = vmatpush1.msra.mxu0 %v32
    %59 = vmatprep.subr.mxu0 0.0
    %60 = vmatpush1.msra.mxu0 %v33
    %61 = vmatprep.subr.mxu0 0.0
    %62 = vmatpush1.msra.mxu0 %v34
    %63 = vmatprep.subr.mxu0 0.0
    %64 = vmatpush1.msra.mxu0 %v35
    %65 = vmatprep.subr.mxu0 0.0
    %66 = vmatpush1.msra.mxu0 %v36
    %67 = vmatprep.subr.mxu0 0.0
    %68 = vmatpush1.msra.mxu0 %v37
    %69 = vmatprep.subr.mxu0 0.0
    %70 = vmatpush1.msra.mxu0 %v38
    %71 = vmatprep.subr.mxu0 0.0
    %72 = vmatpush1.msra.mxu0 0.0
    %73 = vmatprep.subr.mxu0 0.0
    %74 = vmatpush1.msra.mxu0 0.0
    %75 = vmatprep.subr.mxu0 0.0
    %76 = vmatpush1.msra.mxu0 0.0
    %77 = vmatprep.subr.mxu0 0.0
    %78 = vmatpush1.msra.mxu0 0.0
    %79 = vmatprep.subr.mxu0 0.0
    %80 = vmatpush1.msra.mxu0 0.0
    %81 = vmatprep.subr.mxu0 0.0
    %82 = vmatpush1.msra.mxu0 0.0
    %83 = vmatprep.subr.mxu0 0.0
    %84 = vmatpush1.msra.mxu0 0.0
    %85 = vmatprep.subr.mxu0 0.0
    %86 = vmatpush1.msra.mxu0 0.0
    %87 = vmatprep.subr.mxu0 0.0
    %88 = vmatpush1.msra.mxu0 0.0
    %89 = vmatprep.subr.mxu0 0.0
    %90 = vmatpush1.msra.mxu0 0.0
    %91 = vmatprep.subr.mxu0 0.0
    %92 = vmatpush1.msra.mxu0 0.0
    %93 = vmatprep.subr.mxu0 0.0
    %94 = vmatpush1.msra.mxu0 0.0
    %95 = vmatprep.subr.mxu0 0.0
    %96 = vmatpush1.msra.mxu0 0.0
    %97 = vmatprep.subr.mxu0 0.0
    %98 = vmatpush1.msra.mxu0 0.0
    %99 = vmatprep.subr.mxu0 0.0
    %100 = vmatpush1.msra.mxu0 0.0
    %101 = vmatprep.subr.mxu0 0.0
    %102 = vmatpush1.msra.mxu0 0.0
    %103 = vmatprep.mubr.f32.mxu0 0.0
    %104 = vmatmul.mubr.f32.gmra.mrb[0].mxu0 %v21
    %v105 = vpop.f32.mrb[0].mxu0
    %v106 = vadd.f32 0.0, %v105
    %v107 = vpop.f32.mrb[0].mxu0
    %108 = vmatprep.mubr.f32.mxu0 0.0
    %109 = vmatmul.mubr.f32.gmra.mrb[0].mxu0 %v22
    %v110 = vpop.f32.mrb[0].mxu0
    %v111 = vadd.f32 0.0, %v110
    %v112 = vpop.f32.mrb[0].mxu0
    %113 = vdwg.mxu0
    %v114 = vld [vmem:[%s2] sm:$0xff]
    %v115 = vld [vmem:[%s2 + $0x8] sm:$0xff]
    %vm116 = vcmask 130048
    %v118 = vsel %vm116, %v106, 0
    %v121 = vsel %vm116, %v111, 0
    %123 = vmatprep.subr.mxu0 0.0
    %124 = vmatpush1.msra.mxu0 %v114
    %125 = vmatprep.subr.mxu0 0.0
    %126 = vmatpush1.msra.mxu0 %v115
    %127 = vmatprep.subr.mxu0 0.0
    %128 = vmatpush1.msra.mxu0 0.0
    %129 = vmatprep.subr.mxu0 0.0
    %130 = vmatpush1.msra.mxu0 0.0
    %131 = vmatprep.subr.mxu0 0.0
    %132 = vmatpush1.msra.mxu0 0.0
    %133 = vmatprep.subr.mxu0 0.0
    %134 = vmatpush1.msra.mxu0 0.0
    %135 = vmatprep.subr.mxu0 0.0
    %136 = vmatpush1.msra.mxu0 0.0
    %137 = vmatprep.subr.mxu0 0.0
    %138 = vmatpush1.msra.mxu0 0.0
    %139 = vmatprep.subr.mxu0 0.0
    %140 = vmatpush1.msra.mxu0 0.0
    %141 = vmatprep.subr.mxu0 0.0
    %142 = vmatpush1.msra.mxu0 0.0
    %143 = vmatprep.subr.mxu0 0.0
    %144 = vmatpush1.msra.mxu0 0.0
    %145 = vmatprep.subr.mxu0 0.0
    %146 = vmatpush1.msra.mxu0 0.0
    %147 = vmatprep.subr.mxu0 0.0
    %148 = vmatpush1.msra.mxu0 0.0
    %149 = vmatprep.subr.mxu0 0.0
    %150 = vmatpush1.msra.mxu0 0.0
    %151 = vmatprep.subr.mxu0 0.0
    %152 = vmatpush1.msra.mxu0 0.0
    %153 = vmatprep.subr.mxu0 0.0
    %154 = vmatpush1.msra.mxu0 0.0
    %155 = vmatprep.subr.mxu0 0.0
    %156 = vmatpush1.msra.mxu0 0.0
    %157 = vmatprep.subr.mxu0 0.0
    %158 = vmatpush1.msra.mxu0 0.0
    %159 = vmatprep.subr.mxu0 0.0
    %160 = vmatpush1.msra.mxu0 0.0
    %161 = vmatprep.subr.mxu0 0.0
    %162 = vmatpush1.msra.mxu0 0.0
    %163 = vmatprep.subr.mxu0 0.0
    %164 = vmatpush1.msra.mxu0 0.0
    %165 = vmatprep.subr.mxu0 0.0
    %166 = vmatpush1.msra.mxu0 0.0
    %167 = vmatprep.subr.mxu0 0.0
    %168 = vmatpush1.msra.mxu0 0.0
    %169 = vmatprep.subr.mxu0 0.0
    %170 = vmatpush1.msra.mxu0 0.0
    %171 = vmatprep.subr.mxu0 0.0
    %172 = vmatpush1.msra.mxu0 0.0
    %173 = vmatprep.subr.mxu0 0.0
    %174 = vmatpush1.msra.mxu0 0.0
    %175 = vmatprep.subr.mxu0 0.0
    %176 = vmatpush1.msra.mxu0 0.0
    %177 = vmatprep.subr.mxu0 0.0
    %178 = vmatpush1.msra.mxu0 0.0
    %179 = vmatprep.subr.mxu0 0.0
    %180 = vmatpush1.msra.mxu0 0.0
    %181 = vmatprep.subr.mxu0 0.0
    %182 = vmatpush1.msra.mxu0 0.0
    %183 = vmatprep.subr.mxu0 0.0
    %184 = vmatpush1.msra.mxu0 0.0
    %185 = vmatprep.subr.mxu0 0.0
    %186 = vmatpush1.msra.mxu0 0.0
    %187 = vmatprep.mubr.f32.mxu0 0.0
    %188 = vmatmul.mubr.f32.gmra.mrb[0].mxu0 %v118
    %v189 = vpop.f32.mrb[0].mxu0
    %v190 = vadd.f32 0.0, %v189
    %v191 = vpop.f32.mrb[0].mxu0
    %192 = vmatprep.mubr.f32.mxu0 0.0
    %193 = vmatmul.mubr.f32.gmra.mrb[0].mxu0 %v121
    %v194 = vpop.f32.mrb[0].mxu0
    %v195 = vadd.f32 0.0, %v194
    %v196 = vpop.f32.mrb[0].mxu0
    %197 = vdwg.mxu0
    %v198 = vadd.f32 %v21, %v190
    %v199 = vadd.f32 %v22, %v195
    %200 = vadd.xlane.f32.xlu0 %v198
    %v201 = vpop.xlane.xlu0 %200
    %202 = vadd.xlane.f32.xlu0 %v199
    %v203 = vpop.xlane.xlu0 %202
    %v204 = vmul.f32 %v198, %v198
    %v205 = vmul.f32 %v199, %v199
    %206 = vadd.xlane.f32.xlu0 %v204
    %v207 = vpop.xlane.xlu0 %206
    %208 = vadd.xlane.f32.xlu0 %v205
    %v209 = vpop.xlane.xlu0 %208
    %v210 = vmul.f32 %v201, 0.03125
    %v211 = vmul.f32 %v203, 0.03125
    %v212 = vmul.f32 %v207, 0.03125
    %v213 = vmul.f32 %v209, 0.03125
    %v214 = vmul.f32 %v210, %v210
    %v215 = vmul.f32 %v211, %v211
    %v216 = vsub.f32 %v212, %v214
    %v217 = vsub.f32 %v213, %v215
    %v218 = vsub.f32 %v198, %v210
    %v219 = vsub.f32 %v199, %v211
    %v220 = vadd.f32 %v216, 1e-05
    %v221 = vadd.f32 %v217, 1e-05
    %v222 = vrsqrt.pop %v220
    %v223 = vrsqrt.pop %v221
    %v224 = vmul.f32 %v218, %v222
    %v225 = vmul.f32 %v219, %v223
    %v226 = vld [vmem:[%s3] sm:$0x1]
    %v228 = vlaneseq
    %v229 = vshrl.u32 %v228, 7
    %v230 = vsub.s32 0, %v229
    %v231 = vrot.slane %v226, %v230
    %v233 = vmul.f32 %v224, %v231
    %v234 = vmul.f32 %v225, %v231
    %v235 = vld [vmem:[%s4] sm:$0x1]
    %v237 = vlaneseq
    %v238 = vshrl.u32 %v237, 7
    %v239 = vsub.s32 0, %v238
    %v240 = vrot.slane %v235, %v239
    %v242 = vadd.f32 %v233, %v240
    %v243 = vadd.f32 %v234, %v240
    %244 = vst [vmem:[#allocation2] sm:$0xff] %v242
    %245 = vst [vmem:[#allocation2 + $0x8] sm:$0xff] %v243
    // Predicated region
    $region22: #{tpu_custom_call.1} parent=1 // pred_check
      _
    $region23: #{tpu_custom_call.1} parent=1 // pred_check_branch
      %247 = sbr.rel (0) target = $region25
    $region24: #{tpu_custom_call.1} parent=1 // pred_region
      %s249 = ssub.s32 256, 256
      %250 = vsyncadd [#allocation3], %s249
      %s251 = sshll.u32 [#allocation2], 4
      %s252 = int_to_ptr.vmem [resolvable:$true] %s251
      %257 = dma.vmem_to_hbm [thread:$0]  %s252, 256, %s5, [#allocation3], 128, 128, 8
    $region25: #{tpu_custom_call.1} parent=1 // pred_fallthru
      _
    // Predicated region
    $region26: #{tpu_custom_call.1} parent=1 // pred_check
      _
    $region27: #{tpu_custom_call.1} parent=1 // pred_check_branch
      %259 = sbr.rel (0) target = $region29
    $region28: #{tpu_custom_call.1} parent=1 // pred_region
      %260 = dma.done [#allocation3], 256
    $region29: #{tpu_custom_call.1} parent=1 // pred_fallthru
      _
    %261 = vsyncpa [#allocation3], 1

</llo_original>
